<compile_context>
chip_gen: v5e
topology: v5e:2x2
jax: 0.10.0
libtpu: 0.0.40
codegen_flags: <defaults>
</compile_context>

<pallas_src>
import functools
import math

import jax
import jax.numpy as jnp
from jax.experimental import pallas as pl
from jax.experimental.pallas import tpu as pltpu


# ---------------------------------------------------------------------------
# per-generation tuning constants
# ---------------------------------------------------------------------------
def _tpu_budget():
    """(matmul M-tile, scoped VMEM limit) tuned per TPU generation."""
    try:
        vmem = pltpu.get_tpu_info().vmem_capacity_bytes
    except Exception:
        vmem = 0
    if vmem >= 100 * 1024 * 1024:
        # v5e / v6e: 128 MiB physical VMEM -> bigger A/out tiles amortize grid-step
        # overhead and improve HBM streaming efficiency.
        return 512, 64 * 1024 * 1024
    # v7x (64 MiB per TC) or unknown: conservative budget that fits everywhere.
    return 256, 40 * 1024 * 1024


_TM_MAX, _VMEM_LIMIT = _tpu_budget()


# ---------------------------------------------------------------------------
# Pallas kernels
# ---------------------------------------------------------------------------
def _mm_kernel(a_ref, b_ref, c_ref, o_ref, *, act):
    """o = act(A @ B + shift).  BN scale is pre-folded into B offline."""
    acc = jnp.dot(a_ref[...], b_ref[...], preferred_element_type=jnp.float32)
    r = acc + c_ref[...]
    if act == "relu":
        r = jnp.maximum(r, 0.0)
    o_ref[...] = r.astype(o_ref.dtype)


def _mm_res_kernel(a_ref, b_ref, c_ref, id_ref, o_ref, *, act):
    """o = act(A @ B + shift + identity)  (fused residual add for conv3)."""
    acc = jnp.dot(a_ref[...], b_ref[...], preferred_element_type=jnp.float32)
    r = acc + c_ref[...] + id_ref[...].astype(jnp.float32)
    if act == "relu":
        r = jnp.maximum(r, 0.0)
    o_ref[...] = r.astype(o_ref.dtype)


def _conv3x3_kernel(a_hbm, w_ref, c_ref, o_ref, abuf, sem, *, wp, cin, tm, act):
    """3x3 stride-1 conv without im2col.

    a_hbm : (rows_padded, Cin) bf16 in HBM -- padded activation flattened over
            (B, Hp, Wp); output row r corresponds to padded location (b, i, j) and
            tap (di, dj) reads row r + di*Wp + dj.
    w_ref : (9*Cin, Cout) bf16, VMEM resident (BN scale pre-folded).
    c_ref : (1, Cout) f32 BN shift.
    abuf  : (2, tm + 2*Wp + 2, Cin) bf16 double-buffered window scratch.
    """
    i = pl.program_id(0)
    nsteps = pl.num_programs(0)
    win = tm + 2 * wp + 2

    def start_copy(step, slot):
        pltpu.make_async_copy(
            a_hbm.at[pl.ds(step * tm, win), :], abuf.at[slot], sem.at[slot]
        ).start()

    @pl.when(i == 0)
    def _():
        start_copy(0, 0)

    def compute(slot):  # slot is a Python int -> all VMEM indexing is static
        pltpu.make_async_copy(
            a_hbm.at[pl.ds(0, win), :], abuf.at[slot], sem.at[slot]
        ).wait()

        @pl.when(i + 1 < nsteps)
        def _():
            start_copy(i + 1, 1 - slot)

        acc = None
        for t in range(9):
            di, dj = t // 3, t % 3
            a_t = abuf[slot, pl.ds(di * wp + dj, tm), :]
            w_t = w_ref[pl.ds(t * cin, cin), :]
            p = jnp.dot(a_t, w_t, preferred_element_type=jnp.float32)
            acc = p if acc is None else acc + p
        r = acc + c_ref[...]
        if act == "relu":
            r = jnp.maximum(r, 0.0)
        o_ref[...] = r.astype(o_ref.dtype)

    @pl.when(i % 2 == 0)
    def _():
        compute(0)

    @pl.when(i % 2 == 1)
    def _():
        compute(1)


def _gap_kernel(x_ref, o_ref):
    # (B, H*W, tc) bf16 -> (B, tc) bf16, mean in f32.
    o_ref[...] = jnp.mean(x_ref[...].astype(jnp.float32), axis=1).astype(o_ref.dtype)


# ---------------------------------------------------------------------------
# Pallas wrappers
# ---------------------------------------------------------------------------
def matmul_shift_act(a, b, shift, residual=None, *, act="none",
                     out_dtype=jnp.bfloat16):
    """(M,K)@(K,N) + shift[N] (+ identity) (+ReLU).  bf16 MXU inputs, f32 accumulate.

    Grid is (N tiles, M tiles) with the weight block constant over the inner M axis
    so it is DMA'd once per N tile; the N axis only exists for N >= 1024 (lets the
    two v7x TensorCores split the late-stage small-M matmuls).
    """
    M, K = a.shape
    Kb, N = b.shape
    assert K == Kb, (K, Kb)

    a = a.astype(jnp.bfloat16)
    b = b.astype(jnp.bfloat16)
    c2 = shift.reshape(1, N).astype(jnp.float32)

    if M <= _TM_MAX:
        tm, grid_m = M, 1
    else:
        tm, grid_m = _TM_MAX, pl.cdiv(M, _TM_MAX)
    if N > 512 and N % 512 == 0:
        tn, grid_n = 512, N // 512
    else:
        tn, grid_n = N, 1

    in_specs = [
        pl.BlockSpec((tm, K), lambda j, i: (i, 0)),     # A: streamed over M
        pl.BlockSpec((K, tn), lambda j, i: (0, j)),     # B: weights, resident per N tile
        pl.BlockSpec((1, tn), lambda j, i: (0, j)),     # BN shift / bias
    ]
    args = [a, b, c2]
    if residual is not None:
        in_specs.append(pl.BlockSpec((tm, tn), lambda j, i: (i, j)))
        args.append(residual.astype(jnp.bfloat16))
        kern = functools.partial(_mm_res_kernel, act=act)
    else:
        kern = functools.partial(_mm_kernel, act=act)

    cost = pl.CostEstimate(
        flops=2 * M * K * N, transcendentals=0,
        bytes_accessed=2 * (M * K + K * N + 2 * M * N) + 4 * N)

    # TODO(synk): single-buffer the constant-index weight/shift blocks
    # (pipeline_mode=pl.Buffered(1)) once that path is verified on all generations.
    return pl.pallas_call(
        kern,
        out_shape=jax.ShapeDtypeStruct((M, N), out_dtype),
        grid=(grid_n, grid_m),
        in_specs=in_specs,
        out_specs=pl.BlockSpec((tm, tn), lambda j, i: (i, j)),
        compiler_params=pltpu.CompilerParams(
            dimension_semantics=("parallel", "parallel"),
            vmem_limit_bytes=_VMEM_LIMIT),
        cost_estimate=cost,
    )(*args)


@functools.partial(jax.jit, static_argnames=("act",))
def conv3x3_s1(x, wmat, shift, *, act="relu"):
    """3x3 / stride-1 / pad-1 conv + BN shift (+ReLU) without im2col.

    The activation is spatially padded once, flattened to (B*Hp*Wp, Cin) and row-padded
    so every per-step DMA window is in bounds.  Output rows live on the padded grid and
    the valid (H, W) region is sliced out at the end.
    """
    B, H, W, Cin = x.shape
    Cout = wmat.shape[1]
    Hp, Wp = H + 2, W + 2
    M_out = B * Hp * Wp

    if M_out <= _TM_MAX:
        tm, grid_m = M_out, 1
    else:
        tm, grid_m = _TM_MAX, pl.cdiv(M_out, _TM_MAX)
    win = tm + 2 * Wp + 2
    rows_needed = (grid_m - 1) * tm + win

    xp = jnp.pad(x.astype(jnp.bfloat16), ((0, 0), (1, 1), (1, 1), (0, 0)))
    xf = xp.reshape(B * Hp * Wp, Cin)
    extra = rows_needed - B * Hp * Wp
    if extra > 0:
        xf = jnp.pad(xf, ((0, extra), (0, 0)))

    out = pl.pallas_call(
        functools.partial(_conv3x3_kernel, wp=Wp, cin=Cin, tm=tm, act=act),
        out_shape=jax.ShapeDtypeStruct((M_out, Cout), jnp.bfloat16),
        grid=(grid_m,),
        in_specs=[
            pl.BlockSpec(memory_space=pl.ANY),               # activation stays in HBM
            pl.BlockSpec((9 * Cin, Cout), lambda i: (0, 0)),  # folded weights, resident
            pl.BlockSpec((1, Cout), lambda i: (0, 0)),        # BN shift
        ],
        out_specs=pl.BlockSpec((tm, Cout), lambda i: (i, 0)),
        scratch_shapes=[
            pltpu.VMEM((2, win, Cin), jnp.bfloat16),
            pltpu.SemaphoreType.DMA((2,)),
        ],
        compiler_params=pltpu.CompilerParams(
            dimension_semantics=("arbitrary",),   # manual double-buffer needs sequential grid
            vmem_limit_bytes=_VMEM_LIMIT),
        cost_estimate=pl.CostEstimate(
            flops=2 * M_out * 9 * Cin * Cout, transcendentals=0,
            bytes_accessed=2 * (rows_needed * Cin + 9 * Cin * Cout + M_out * Cout)),
    )(xf, wmat, shift.reshape(1, Cout).astype(jnp.float32))

    # TODO(synk): the valid-region slice costs one extra pass over the conv2 output;
    # feeding the padded layout straight into the following 1x1 conv would remove it.
    return out.reshape(B, Hp, Wp, Cout)[:, :H, :W, :]


@functools.partial(jax.jit, static_argnames=("stride", "act"))
def conv1x1(x, wmat, shift, residual=None, *, stride=1, act="none"):
    """1x1 conv + BN shift (+ fused residual add) (+ReLU) as a single Pallas matmul."""
    B, H, W, Cin = x.shape
    Cout = wmat.shape[1]
    if stride > 1:
        x = x[:, ::stride, ::stride, :]
    Ho, Wo = x.shape[1], x.shape[2]
    a = x.reshape(B * Ho * Wo, Cin)
    res = None if residual is None else residual.reshape(B * Ho * Wo, Cout)
    out = matmul_shift_act(a, wmat, shift, res, act=act)
    return out.reshape(B, Ho, Wo, Cout)


@functools.partial(jax.jit, static_argnames=("kh", "kw", "stride", "pad", "act"))
def conv_im2col(x, wmat, shift, *, kh, kw, stride, pad, act):
    """General conv via im2col + Pallas matmul (only the 7x7 stem and 3 stride-2 3x3s)."""
    B, H, W, Cin = x.shape
    Cout = wmat.shape[1]
    if pad > 0:
        x = jnp.pad(x, ((0, 0), (pad, pad), (pad, pad), (0, 0)))
    Ho = (H + 2 * pad - kh) // stride + 1
    Wo = (W + 2 * pad - kw) // stride + 1
    patches = [x[:, i:i + stride * Ho:stride, j:j + stride * Wo:stride, :]
               for i in range(kh) for j in range(kw)]
    cols = jnp.concatenate(patches, axis=-1).reshape(B * Ho * Wo, kh * kw * Cin)
    out = matmul_shift_act(cols, wmat, shift, act=act)
    return out.reshape(B, Ho, Wo, Cout)


@jax.jit
def global_avg_pool(x):
    """NHWC bf16 -> (B, C) bf16 spatial mean, gridded over C tiles."""
    B, H, W, C = x.shape
    x2 = x.reshape(B, H * W, C)
    tc = 512 if (C % 512 == 0 and C > 512) else C
    grid_c = C // tc
    return pl.pallas_call(
        _gap_kernel,
        out_shape=jax.ShapeDtypeStruct((B, C), jnp.bfloat16),
        grid=(grid_c,),
        in_specs=[pl.BlockSpec((B, H * W, tc), lambda j: (0, 0, j))],
        out_specs=pl.BlockSpec((B, tc), lambda j: (0, j)),
        compiler_params=pltpu.CompilerParams(
            dimension_semantics=("parallel",),
            vmem_limit_bytes=_VMEM_LIMIT),
    )(x2)


def max_pool_3x3_s2(x):
    # TODO(synk): 3x3/s2 max-pool kept as lax.reduce_window glue (small, non-matmul op).
    return jax.lax.reduce_window(
        x, jnp.array(-jnp.inf, dtype=x.dtype), jax.lax.max,
        window_dimensions=(1, 3, 3, 1),
        window_strides=(1, 2, 2, 1),
        padding=((0, 0), (1, 1), (1, 1), (0, 0)))


# ---------------------------------------------------------------------------
# deterministic synthetic parameters (inference BN folded: scale into the bf16
# weights (folded in f32, then cast), shift kept for the matmul epilogue)
# ---------------------------------------------------------------------------
class KeyGen:
    def __init__(self, key):
        self.key = key
        self.i = 0

    def __call__(self):
        self.i += 1
        return jax.random.fold_in(self.key, self.i)


def _init_conv(key, cout, cin, kh, kw):
    fan_in = cin * kh * kw
    return jax.random.normal(key, (cout, cin, kh, kw), jnp.float32) / math.sqrt(fan_in)


def _init_bn(key, c):
    k1, k2, k3 = jax.random.split(key, 3)
    gamma = 1.0 + 0.1 * jax.random.normal(k1, (c,), jnp.float32)
    beta = 0.1 * jax.random.normal(k2, (c,), jnp.float32)
    mean = 0.05 * jax.random.normal(k3, (c,), jnp.float32)
    var = jnp.ones((c,), jnp.float32)
    eps = 1e-5
    scale = gamma / jnp.sqrt(var + eps)
    shift = beta - mean * scale
    return scale, shift


def _make_conv_bn(kg, cout, cin, kh, kw):
    """PyTorch (Cout,Cin,kh,kw) conv + BN -> folded (kh*kw*Cin, Cout) bf16 + f32 shift."""
    w = _init_conv(kg(), cout, cin, kh, kw)
    scale, shift = _init_bn(kg(), cout)
    wmat = jnp.transpose(w, (2, 3, 1, 0)).reshape(kh * kw * cin, cout)
    wmat = (wmat * scale[None, :]).astype(jnp.bfloat16)      # fold in f32, then cast
    return {"w": wmat, "shift": shift, "kh": kh, "kw": kw}


def _make_bottleneck(kg, in_c, width, stride, downsample):
    p = {
        "conv1": _make_conv_bn(kg, width, in_c, 1, 1),
        "conv2": _make_conv_bn(kg, width, width, 3, 3),
        "conv3": _make_conv_bn(kg, width * 4, width, 1, 1),
        "stride": stride,
    }
    if downsample:
        p["down"] = _make_conv_bn(kg, width * 4, in_c, 1, 1)
    return p


def build_resnet50_params(key):
    kg = KeyGen(key)
    params = {
        "conv1": _make_conv_bn(kg, 64, 3, 7, 7),
        "layers": [],
    }
    in_c = 64
    for width, num_blocks, stride in [(64, 3, 1), (128, 4, 2), (256, 6, 2), (512, 3, 2)]:
        blocks = [_make_bottleneck(kg, in_c, width, stride,
                                   downsample=(stride != 1 or in_c != width * 4))]
        in_c = width * 4
        for _ in range(num_blocks - 1):
            blocks.append(_make_bottleneck(kg, in_c, width, 1, downsample=False))
        params["layers"].append(blocks)
    fc_w = jax.random.normal(kg(), (1000, 2048), jnp.float32) / math.sqrt(2048.0)
    params["fc_w"] = fc_w.T.astype(jnp.bfloat16)          # pre-transposed (2048, 1000)
    params["fc_b"] = 0.01 * jax.random.normal(kg(), (1000,), jnp.float32)
    return params


# ---------------------------------------------------------------------------
# forward pass
# ---------------------------------------------------------------------------
def bottleneck_forward(x, p):
    s = p["stride"]
    out = conv1x1(x, p["conv1"]["w"], p["conv1"]["shift"], stride=1, act="relu")
    if s == 1:
        out = conv3x3_s1(out, p["conv2"]["w"], p["conv2"]["shift"], act="relu")
    else:
        out = conv_im2col(out, p["conv2"]["w"], p["conv2"]["shift"],
                          kh=3, kw=3, stride=s, pad=1, act="relu")
    if "down" in p:
        identity = conv1x1(x, p["down"]["w"], p["down"]["shift"], stride=s, act="none")
    else:
        identity = x
    # conv3 with the residual add + ReLU fused into the matmul epilogue.
    return conv1x1(out, p["conv3"]["w"], p["conv3"]["shift"], identity,
                   stride=1, act="relu")


def resnet50_forward(x_nchw, params):
    # layout: PyTorch NCHW f32 input -> NHWC bf16 internally; output (B, 1000) f32.
    x = jnp.transpose(x_nchw, (0, 2, 3, 1)).astype(jnp.bfloat16)
    # TODO(synk): the 7x7 stem (K=147, N=64) under-fills the MXU; a space-to-depth
    # restructuring would improve it but is low priority.
    x = conv_im2col(x, params["conv1"]["w"], params["conv1"]["shift"],
                    kh=7, kw=7, stride=2, pad=3, act="relu")
    x = max_pool_3x3_s2(x)
    for layer in params["layers"]:
        for blk in layer:
            x = bottleneck_forward(x, blk)
    x = global_avg_pool(x)                                   # (B, 2048) bf16
    logits = matmul_shift_act(x, params["fc_w"], params["fc_b"],
                              act="none", out_dtype=jnp.float32)
    return logits                                            # (B, 1000) f32


# ---------------------------------------------------------------------------
if __name__ == "__main__":
    key = jax.random.PRNGKey(0)
    pkey, xkey = jax.random.split(key)
    params = build_resnet50_params(pkey)
    # small but architecture-consistent input: B x 3 x H x W
    x = jax.random.normal(xkey, (2, 3, 64, 64), jnp.float32)
    logits = resnet50_forward(x, params)
    logits = jax.block_until_ready(logits)
    assert logits.shape == (2, 1000), logits.shape
    assert bool(jnp.all(jnp.isfinite(logits)))
    print("KERNEL_OK")
</pallas_src>

<mosaic_0001>
module attributes {stable_mosaic.version = 11 : i64} {
  func.func @_mm_kernel(%arg0: i32, %arg1: i32, %arg2: memref<256x147xbf16, #tpu.memory_space<vmem>>, %arg3: memref<147x64xbf16, #tpu.memory_space<vmem>>, %arg4: memref<1x64xf32, #tpu.memory_space<vmem>>, %arg5: memref<256x64xbf16, #tpu.memory_space<vmem>>) attributes {dimension_semantics = [#tpu.dimension_semantics<parallel>, #tpu.dimension_semantics<parallel>], iteration_bounds = array<i64: 1, 8>, scalar_prefetch = 0 : i64, scratch_operands = 0 : i64, tpu.core_type = #tpu.core_type<tc>, window_params = [{transform_indices = @transform_0, window_bounds = array<i64: 256, 147>}, {transform_indices = @transform_1, window_bounds = array<i64: 147, 64>}, {transform_indices = @transform_2, window_bounds = array<i64: 1, 64>}, {transform_indices = @transform_3, window_bounds = array<i64: 256, 64>}]} {
    %c0 = arith.constant 0 : index
    %c0_0 = arith.constant 0 : index
    %0 = vector.load %arg2[%c0, %c0_0] : memref<256x147xbf16, #tpu.memory_space<vmem>>, vector<256x147xbf16>
    %c0_1 = arith.constant 0 : index
    %c0_2 = arith.constant 0 : index
    %1 = vector.load %arg3[%c0_1, %c0_2] : memref<147x64xbf16, #tpu.memory_space<vmem>>, vector<147x64xbf16>
    %cst = arith.constant dense<0.000000e+00> : vector<256x64xf32>
    %2 = tpu.matmul %0, %1, %cst {dimension_numbers = #tpu.dot_dimension_numbers<[1], [0], [0], [1], [0, 0, 1, 1], [], []>} : vector<256x147xbf16>, vector<147x64xbf16>, vector<256x64xf32> -> vector<256x64xf32>
    %c0_3 = arith.constant 0 : index
    %c0_4 = arith.constant 0 : index
    %3 = vector.load %arg4[%c0_3, %c0_4] : memref<1x64xf32, #tpu.memory_space<vmem>>, vector<1x64xf32>
    %4 = vector.broadcast %3 : vector<1x64xf32> to vector<256x64xf32>
    %5 = arith.addf %2, %4 : vector<256x64xf32>
    %cst_5 = arith.constant 0.000000e+00 : f32
    %6 = vector.broadcast %cst_5 : f32 to vector<256x64xf32>
    %7 = arith.maximumf %5, %6 : vector<256x64xf32>
    %8 = arith.truncf %7 : vector<256x64xf32> to vector<256x64xbf16>
    %c0_6 = arith.constant 0 : index
    %c0_7 = arith.constant 0 : index
    %9 = vector.load %arg5[%c0_6, %c0_7] : memref<256x64xbf16, #tpu.memory_space<vmem>>, vector<256x64xbf16>
    tpu.vector_store %arg5[%c0_6, %c0_7], %8 {strides = array<i32>} : memref<256x64xbf16, #tpu.memory_space<vmem>>, vector<256x64xbf16>,
    return
  }
  func.func @transform_0(%arg0: i32, %arg1: i32) -> (i32, i32) {
    %c0_i32 = arith.constant 0 : i32
    %c0_i32_0 = arith.constant 0 : i32
    return %arg1, %c0_i32 : i32, i32
  }
  func.func @transform_1(%arg0: i32, %arg1: i32) -> (i32, i32) {
    %c0_i32 = arith.constant 0 : i32
    %c0_i32_0 = arith.constant 0 : i32
    return %c0_i32, %arg0 : i32, i32
  }
  func.func @transform_2(%arg0: i32, %arg1: i32) -> (i32, i32) {
    %c0_i32 = arith.constant 0 : i32
    %c0_i32_0 = arith.constant 0 : i32
    return %c0_i32, %arg0 : i32, i32
  }
  func.func @transform_3(%arg0: i32, %arg1: i32) -> (i32, i32) {
    %c0_i32 = arith.constant 0 : i32
    return %arg1, %arg0 : i32, i32
  }
}

</mosaic_0001>

<llo_original>
// kernel: conv_im2col.1
$region0: #{conv_im2col.1}
  #allocation0 [shape = 'u32[]', space=smem, size = 0x4, offset = 0x4, fixed_abs, tag = 'smem constant byte address 0x4 - core index']
  #allocation1 [shape = 'u32[72,128]{1,0:T(1,128)}', space=vmem, size = 0x9000, scoped, tag = 'internal scratch']
  %s0 = inlined_call_operand.vmem [shape: bf16[2048,147], index: 0, kind: input, shape index: {}]
  %s1 = inlined_call_operand.vmem [shape: bf16[147,64], index: 1, kind: input, shape index: {}]
  %s2 = inlined_call_operand.vmem [shape: f32[1,64], index: 2, kind: input, shape index: {}]
  %s3 = inlined_call_operand.hbm [shape: bf16[2048,64], index: 3, kind: output, shape index: {}]
  %s4 = sld [smem:[#allocation0]]
  $region45: #{conv_im2col.1} parent=0
    _
  %s6 = ssub.s32 1, %s4
  %s7 = scalar_select 0, %s6, %s4
  $region1: #{conv_im2col.1} parent=0
    #allocation2 [shape = 'u8[131072]{0}', space=vmem, size = 0x20000, scoped, tag = 'output window, operand 0']
    #allocation3 [shape = 's32[2]{0}', space=sflag, size = 0x8, scoped, tag = 'scoped memory for conv_im2col.1']
    %8 = vsyncpa [#allocation3], 0
    %s9 = scalar_lea.sflag [#allocation3], 1
    %10 = vsyncpa %s9, 0
    loop: start=0, step=1, limit=10
    $region2: #{conv_im2col.1} parent=1 // loop_pre_header
      _
    $region3: #{conv_im2col.1} parent=1 // loop_header
      %s12 = sphi 0, %s16
      %p13 = scmp.ge.s32.totalorder %s12, 10
      %s19 = sphi 0, %s31
      %s20 = sphi 0, %s27
      %s21 = sphi 0, %s19
      %s22 = sphi 0, %s20
      %s23 = sphi 0, %s21
      %s24 = sphi 0, %s22
      %s34 = sphi 0, %s36
      %s37 = sphi 0, %s34
      %s38 = sphi 0, %s37
      %s54 = sphi 0, %s38
      %s60 = sphi 0, %s62
      %s63 = sphi 0, %s60
      %s64 = sphi 0, %s63
      %s80 = sphi 0, %s64
      %s86 = sphi 0, %s88
      %s89 = sphi 0, %s86
      %s90 = sphi 0, %s89
      %s106 = sphi 0, %s90
      %s114 = sphi 0, %s116
      %s117 = sphi 0, %s114
      %s118 = sphi 0, %s117
      %s134 = sphi 0, %s118
    $region4: #{conv_im2col.1} parent=1 // loop_header_branch
      %15 = sbr.rel (%p13) target = $region8
    $region5: #{conv_im2col.1} parent=1 // loop_body
      %s17 = ssub.s32 %s12, 1
      %s18 = ssub.s32 %s12, 2
      %s25 = sadd.s32 1, %s20
      %p26 = scmp.ge.s32.totalorder %s25, 8
      %s27 = scalar_select %p26, 0, %s25
      %s28 = sadd.s32 1, %s19
      %s29 = scalar_select %p26, %s28, %s19
      %p30 = scmp.ge.s32.totalorder %s29, 1
      %s31 = scalar_select %p30, 0, %s29
      %s32 = ssub.s32 %s20, %s27
      %p33 = scmp.eq.s32.totalorder %s32, 0
      %s35 = sadd.s32 %s34, 1
      %s36 = scalar_select %p33, %s34, %s35
      %p39 = pneg %p33
      %p40 = scmp.eq.s32.totalorder %s12, 7
      %p41 = por %p39, %p40
      %p42 = scmp.ne.s32.totalorder %s34, %s37
      %p43 = scmp.eq.s32.totalorder %s12, 0
      %p44 = por %p42, %p43
      %p45 = scmp.ne.s32.totalorder %s34, %s37
      %p46 = scmp.eq.s32.totalorder %s17, 7
      %p47 = por %p45, %p46
      %p48 = scmp.ne.s32.totalorder %s37, %s38
      %p49 = scmp.eq.s32.totalorder %s17, 0
      %p50 = por %p48, %p49
      %p51 = scmp.ne.s32.totalorder %s37, %s38
      %p52 = scmp.eq.s32.totalorder %s18, 7
      %p53 = por %p51, %p52
      %p55 = scmp.ne.s32.totalorder %s38, %s54
      %p56 = scmp.eq.s32.totalorder %s18, 0
      %p57 = por %p55, %p56
      %s58 = ssub.s32 %s19, %s31
      %p59 = scmp.eq.s32.totalorder %s58, 0
      %s61 = sadd.s32 %s60, 1
      %s62 = scalar_select %p59, %s60, %s61
      %p65 = pneg %p59
      %p66 = scmp.eq.s32.totalorder %s12, 7
      %p67 = por %p65, %p66
      %p68 = scmp.ne.s32.totalorder %s60, %s63
      %p69 = scmp.eq.s32.totalorder %s12, 0
      %p70 = por %p68, %p69
      %p71 = scmp.ne.s32.totalorder %s60, %s63
      %p72 = scmp.eq.s32.totalorder %s17, 7
      %p73 = por %p71, %p72
      %p74 = scmp.ne.s32.totalorder %s63, %s64
      %p75 = scmp.eq.s32.totalorder %s17, 0
      %p76 = por %p74, %p75
      %p77 = scmp.ne.s32.totalorder %s63, %s64
      %p78 = scmp.eq.s32.totalorder %s18, 7
      %p79 = por %p77, %p78
      %p81 = scmp.ne.s32.totalorder %s64, %s80
      %p82 = scmp.eq.s32.totalorder %s18, 0
      %p83 = por %p81, %p82
      %s84 = ssub.s32 %s19, %s31
      %p85 = scmp.eq.s32.totalorder %s84, 0
      %s87 = sadd.s32 %s86, 1
      %s88 = scalar_select %p85, %s86, %s87
      %p91 = pneg %p85
      %p92 = scmp.eq.s32.totalorder %s12, 7
      %p93 = por %p91, %p92
      %p94 = scmp.ne.s32.totalorder %s86, %s89
      %p95 = scmp.eq.s32.totalorder %s12, 0
      %p96 = por %p94, %p95
      %p97 = scmp.ne.s32.totalorder %s86, %s89
      %p98 = scmp.eq.s32.totalorder %s17, 7
      %p99 = por %p97, %p98
      %p100 = scmp.ne.s32.totalorder %s89, %s90
      %p101 = scmp.eq.s32.totalorder %s17, 0
      %p102 = por %p100, %p101
      %p103 = scmp.ne.s32.totalorder %s89, %s90
      %p104 = scmp.eq.s32.totalorder %s18, 7
      %p105 = por %p103, %p104
      %p107 = scmp.ne.s32.totalorder %s90, %s106
      %p108 = scmp.eq.s32.totalorder %s18, 0
      %p109 = por %p107, %p108
      %s110 = ssub.s32 %s20, %s27
      %s111 = ssub.s32 %s19, %s31
      %s112 = sor.u32 %s110, %s111
      %p113 = scmp.eq.s32.totalorder %s112, 0
      %s115 = sadd.s32 %s114, 1
      %s116 = scalar_select %p113, %s114, %s115
      %p119 = pneg %p113
      %p120 = scmp.eq.s32.totalorder %s12, 7
      %p121 = por %p119, %p120
      %p122 = scmp.ne.s32.totalorder %s114, %s117
      %p123 = scmp.eq.s32.totalorder %s12, 0
      %p124 = por %p122, %p123
      %p125 = scmp.ne.s32.totalorder %s114, %s117
      %p126 = scmp.eq.s32.totalorder %s17, 7
      %p127 = por %p125, %p126
      %p128 = scmp.ne.s32.totalorder %s117, %s118
      %p129 = scmp.eq.s32.totalorder %s17, 0
      %p130 = por %p128, %p129
      %p131 = scmp.ne.s32.totalorder %s117, %s118
      %p132 = scmp.eq.s32.totalorder %s18, 7
      %p133 = por %p131, %p132
      %p135 = scmp.ne.s32.totalorder %s118, %s134
      %p136 = scmp.eq.s32.totalorder %s18, 0
      %p137 = por %p135, %p136
      %p138 = scmp.le.s32.totalorder 1, %s12
      %p139 = scmp.lt.s32.totalorder %s12, 9
      %p140 = pnand %p138, %p139
      %p141 = pneg %p140
      // Predicated region
      $region9: #{conv_im2col.1} parent=5 // pred_check
        _
      $region10: #{conv_im2col.1} parent=5 // pred_check_branch
        %143 = sbr.rel (%p140) target = $region12
      $region11: #{conv_im2col.1} parent=5 // pred_region
        %s144 = ssub.s32 %s12, 1
        // Predicated region
        $region13: #{conv_im2col.1} parent=11 // pred_check
          %p145 = pneg %p76
        $region14: #{conv_im2col.1} parent=11 // pred_check_branch
          %147 = sbr.rel (%p145) target = $region16
        $region15: #{conv_im2col.1} parent=11 // pred_region
          %p148 = scmp.lt.s32.totalorder %s21, 0
          %s149 = scalar_select %p148, %s21, 0
          %s150 = smul.addr %s149, 4
          %s151 = scalar_lea.vmem %s1, %s150
        $region16: #{conv_im2col.1} parent=11 // pred_fallthru
          _
        // Predicated region
        $region17: #{conv_im2col.1} parent=11 // pred_check
          %p152 = pneg %p102
        $region18: #{conv_im2col.1} parent=11 // pred_check_branch
          %154 = sbr.rel (%p152) target = $region20
        $region19: #{conv_im2col.1} parent=11 // pred_region
          %p155 = scmp.lt.s32.totalorder %s21, 0
          %s156 = scalar_select %p155, %s21, 0
          %s157 = scalar_lea.vmem %s2, %s156
        $region20: #{conv_im2col.1} parent=11 // pred_fallthru
          _
      $region12: #{conv_im2col.1} parent=5 // pred_fallthru
        _
      %p158 = scmp.lt.s32.totalorder %s12, 8
      // Predicated region
      $region21: #{conv_im2col.1} parent=5 // pred_check
        %p159 = pneg %p158
      $region22: #{conv_im2col.1} parent=5 // pred_check_branch
        %161 = sbr.rel (%p159) target = $region24
      $region23: #{conv_im2col.1} parent=5 // pred_region
        // Predicated region
        $region25: #{conv_im2col.1} parent=23 // pred_check
          %p162 = pneg %p44
        $region26: #{conv_im2col.1} parent=23 // pred_check_branch
          %164 = sbr.rel (%p162) target = $region28
        $region27: #{conv_im2col.1} parent=23 // pred_region
          %s165 = smul.u32 32, %s20
          %p166 = scmp.lt.s32.totalorder %s165, 255
          %s167 = scalar_select %p166, %s165, 255
          %s168 = smul.addr %s167, 2
          %s169 = smul.addr %s168, 4
          %s170 = scalar_lea.vmem %s0, %s169
          %s171 = smul.u32 32, %s20
        $region28: #{conv_im2col.1} parent=23 // pred_fallthru
          _
      $region24: #{conv_im2col.1} parent=5 // pred_fallthru
        _
      %p172 = scmp.le.s32.totalorder 1, %s12
      %p173 = scmp.lt.s32.totalorder %s12, 9
      %p174 = pnand %p172, %p173
      %p175 = pneg %p174
      // Predicated region
      $region29: #{conv_im2col.1} parent=5 // pred_check
        _
      $region30: #{conv_im2col.1} parent=5 // pred_check_branch
        %177 = sbr.rel (%p174) target = $region32
      $region31: #{conv_im2col.1} parent=5 // pred_region
        %s178 = ssub.s32 %s12, 1
        %s179 = smul.u32 32, %s22
        %p180 = scmp.lt.s32.totalorder %s179, 255
        %s181 = scalar_select %p180, %s179, 255
        %s182 = smul.addr %s181, 2
        %s183 = smul.addr %s182, 4
        %s184 = scalar_lea.vmem %s0, %s183
        %p185 = pneg %p50
        %p186 = pneg %p47
        %p187 = scmp.lt.s32.totalorder %s21, 0
        %s188 = scalar_select %p187, %s21, 0
        %s189 = smul.addr %s188, 4
        %s190 = scalar_lea.vmem %s1, %s189
        %p191 = pneg %p76
        %p192 = pneg %p73
        %p193 = scmp.lt.s32.totalorder %s21, 0
        %s194 = scalar_select %p193, %s21, 0
        %s195 = scalar_lea.vmem %s2, %s194
        %p196 = pneg %p102
        %p197 = pneg %p99
        %p198 = pneg %p130
        %p199 = pneg %p127
        %s200 = sand.u32 %s117, 1
        %s201 = scalar_lea.sflag [#allocation3], %s200
        %s202 = sand.u32 %s117, 1
        %s203 = smul.addr %s202, 128
        %s204 = scalar_lea.vmem [#allocation2], %s203
        %s205 = smul.u32 32, %s22
        %p206 = scmp.lt.s32.totalorder %s205, 255
        %s207 = scalar_select %p206, %s205, 255
        %s208 = smul.addr %s207, 2
        %s209 = smul.addr %s208, 4
        %s210 = scalar_lea.vmem %s0, %s209
        %s211 = smul.u32 32, %s22
        %p212 = scmp.lt.s32.totalorder %s21, 0
        %s213 = scalar_select %p212, %s21, 0
        %s214 = smul.addr %s213, 4
        %s215 = scalar_lea.vmem %s1, %s214
        %p216 = scmp.lt.s32.totalorder %s21, 0
        %s217 = scalar_select %p216, %s21, 0
        %s218 = scalar_lea.vmem %s2, %s217
        %s219 = smul.u32 32, %s22
        %v221 = vld [vmem:[%s210] sm:$0xff]
        %v222 = vld [vmem:[%s210 + $0x8] sm:$0xff]
        %v223 = vld [vmem:[%s210 + $0x10] sm:$0xff]
        %v224 = vld [vmem:[%s210 + $0x18] sm:$0xff]
        %v225 = vld [vmem:[%s210 + $0x20] sm:$0xff]
        %v226 = vld [vmem:[%s210 + $0x28] sm:$0xff]
        %v227 = vld [vmem:[%s210 + $0x30] sm:$0xff]
        %v228 = vld [vmem:[%s210 + $0x38] sm:$0xff]
        %v229 = vld [vmem:[%s210 + $0x40] sm:$0xff]
        %v230 = vld [vmem:[%s210 + $0x48] sm:$0xff]
        %v231 = vld [vmem:[%s210 + $0x50] sm:$0xff]
        %v232 = vld [vmem:[%s210 + $0x58] sm:$0xff]
        %v233 = vld [vmem:[%s210 + $0x60] sm:$0xff]
        %v234 = vld [vmem:[%s210 + $0x68] sm:$0xff]
        %v235 = vld [vmem:[%s210 + $0x70] sm:$0xff]
        %v236 = vld [vmem:[%s210 + $0x78] sm:$0xff]
        %v237 = vld [vmem:[%s210 + $0x80] sm:$0xff]
        %v238 = vld [vmem:[%s210 + $0x88] sm:$0xff]
        %v239 = vld [vmem:[%s210 + $0x90] sm:$0xff]
        %v240 = vld [vmem:[%s210 + $0x98] sm:$0xff]
        %v241 = vld [vmem:[%s210 + $0xa0] sm:$0xff]
        %v242 = vld [vmem:[%s210 + $0xa8] sm:$0xff]
        %v243 = vld [vmem:[%s210 + $0xb0] sm:$0xff]
        %v244 = vld [vmem:[%s210 + $0xb8] sm:$0xff]
        %v245 = vld [vmem:[%s210 + $0xc0] sm:$0xff]
        %v246 = vld [vmem:[%s210 + $0xc8] sm:$0xff]
        %v247 = vld [vmem:[%s210 + $0xd0] sm:$0xff]
        %v248 = vld [vmem:[%s210 + $0xd8] sm:$0xff]
        %v249 = vld [vmem:[%s210 + $0xe0] sm:$0xff]
        %v250 = vld [vmem:[%s210 + $0xe8] sm:$0xff]
        %v251 = vld [vmem:[%s210 + $0xf0] sm:$0xff]
        %v252 = vld [vmem:[%s210 + $0xf8] sm:$0xff]
        %v253 = vld [vmem:[%s215] sm:$0xf]
        %v254 = vld [vmem:[%s215 + $0x4] sm:$0xf]
        %v255 = vld [vmem:[%s215 + $0x8] sm:$0xf]
        %v256 = vld [vmem:[%s215 + $0xc] sm:$0xf]
        %v257 = vld [vmem:[%s215 + $0x10] sm:$0xf]
        %v258 = vld [vmem:[%s215 + $0x14] sm:$0xf]
        %v259 = vld [vmem:[%s215 + $0x18] sm:$0xf]
        %v260 = vld [vmem:[%s215 + $0x1c] sm:$0xf]
        %v261 = vld [vmem:[%s215 + $0x20] sm:$0xf]
        %v262 = vld [vmem:[%s215 + $0x24] sm:$0xf]
        %v263 = vld [vmem:[%s215 + $0x28] sm:$0xf]
        %v264 = vld [vmem:[%s215 + $0x2c] sm:$0xf]
        %v265 = vld [vmem:[%s215 + $0x30] sm:$0xf]
        %v266 = vld [vmem:[%s215 + $0x34] sm:$0xf]
        %v267 = vld [vmem:[%s215 + $0x38] sm:$0xf]
        %v268 = vld [vmem:[%s215 + $0x3c] sm:$0xf]
        %v269 = vld [vmem:[%s215 + $0x40] sm:$0xf]
        %v270 = vld [vmem:[%s215 + $0x44] sm:$0xf]
        %v271 = vld [vmem:[%s215 + $0x48] sm:$0x3]
        %v272 = vld [vmem:[%s218] sm:$0x1]
        %v274 = vperm.slane %v272, 0
        %v308 = vunpack.c.l.b16 %v221
        %v309 = vunpack.c.h.b16 %v221
        %v310 = vunpack.c.l.b16 %v222
        %v311 = vunpack.c.h.b16 %v222
        %v312 = vunpack.c.l.b16 %v223
        %v313 = vunpack.c.h.b16 %v223
        %v314 = vunpack.c.l.b16 %v224
        %v315 = vunpack.c.h.b16 %v224
        %v316 = vunpack.c.l.b16 %v225
        %v317 = vunpack.c.h.b16 %v225
        %v318 = vunpack.c.l.b16 %v226
        %v319 = vunpack.c.h.b16 %v226
        %v320 = vunpack.c.l.b16 %v227
        %v321 = vunpack.c.h.b16 %v227
        %v322 = vunpack.c.l.b16 %v228
        %v323 = vunpack.c.h.b16 %v228
        %v324 = vunpack.c.l.b16 %v229
        %v325 = vunpack.c.h.b16 %v229
        %v326 = vunpack.c.l.b16 %v230
        %v327 = vunpack.c.h.b16 %v230
        %v328 = vunpack.c.l.b16 %v231
        %v329 = vunpack.c.h.b16 %v231
        %v330 = vunpack.c.l.b16 %v232
        %v331 = vunpack.c.h.b16 %v232
        %v332 = vunpack.c.l.b16 %v233
        %v333 = vunpack.c.h.b16 %v233
        %v334 = vunpack.c.l.b16 %v234
        %v335 = vunpack.c.h.b16 %v234
        %v336 = vunpack.c.l.b16 %v235
        %v337 = vunpack.c.h.b16 %v235
        %v338 = vunpack.c.l.b16 %v236
        %v339 = vunpack.c.h.b16 %v236
        %v340 = vunpack.c.l.b16 %v237
        %v341 = vunpack.c.h.b16 %v237
        %v342 = vunpack.c.l.b16 %v238
        %v343 = vunpack.c.h.b16 %v238
        %v344 = vunpack.c.l.b16 %v239
        %v345 = vunpack.c.h.b16 %v239
        %v346 = vunpack.c.l.b16 %v240
        %v347 = vunpack.c.h.b16 %v240
        %v348 = vunpack.c.l.b16 %v241
        %v349 = vunpack.c.h.b16 %v241
        %v350 = vunpack.c.l.b16 %v242
        %v351 = vunpack.c.h.b16 %v242
        %v352 = vunpack.c.l.b16 %v243
        %v353 = vunpack.c.h.b16 %v243
        %v354 = vunpack.c.l.b16 %v244
        %v355 = vunpack.c.h.b16 %v244
        %v356 = vunpack.c.l.b16 %v245
        %v357 = vunpack.c.h.b16 %v245
        %v358 = vunpack.c.l.b16 %v246
        %v359 = vunpack.c.h.b16 %v246
        %v360 = vunpack.c.l.b16 %v247
        %v361 = vunpack.c.h.b16 %v247
        %v362 = vunpack.c.l.b16 %v248
        %v363 = vunpack.c.h.b16 %v248
        %v364 = vunpack.c.l.b16 %v249
        %v365 = vunpack.c.h.b16 %v249
        %v366 = vunpack.c.l.b16 %v250
        %v367 = vunpack.c.h.b16 %v250
        %v368 = vunpack.c.l.b16 %v251
        %v369 = vunpack.c.h.b16 %v251
        %v370 = vunpack.c.l.b16 %v252
        %v371 = vunpack.c.h.b16 %v252
        %v372 = vpack.c.b16 %v310, %v308
        %v373 = vpack.c.b16 %v311, %v309
        %v374 = vpack.c.b16 %v314, %v312
        %v375 = vpack.c.b16 %v315, %v313
        %v376 = vpack.c.b16 %v318, %v316
        %v377 = vpack.c.b16 %v319, %v317
        %v378 = vpack.c.b16 %v322, %v320
        %v379 = vpack.c.b16 %v323, %v321
        %v380 = vpack.c.b16 %v326, %v324
        %v381 = vpack.c.b16 %v327, %v325
        %v382 = vpack.c.b16 %v330, %v328
        %v383 = vpack.c.b16 %v331, %v329
        %v384 = vpack.c.b16 %v334, %v332
        %v385 = vpack.c.b16 %v335, %v333
        %v386 = vpack.c.b16 %v338, %v336
        %v387 = vpack.c.b16 %v339, %v337
        %v388 = vpack.c.b16 %v342, %v340
        %v389 = vpack.c.b16 %v343, %v341
        %v390 = vpack.c.b16 %v346, %v344
        %v391 = vpack.c.b16 %v347, %v345
        %v392 = vpack.c.b16 %v350, %v348
        %v393 = vpack.c.b16 %v351, %v349
        %v394 = vpack.c.b16 %v354, %v352
        %v395 = vpack.c.b16 %v355, %v353
        %v396 = vpack.c.b16 %v358, %v356
        %v397 = vpack.c.b16 %v359, %v357
        %v398 = vpack.c.b16 %v362, %v360
        %v399 = vpack.c.b16 %v363, %v361
        %v400 = vpack.c.b16 %v366, %v364
        %v401 = vpack.c.b16 %v367, %v365
        %v402 = vpack.c.b16 %v370, %v368
        %v403 = vpack.c.b16 %v371, %v369
        %v439 = vunpack.c.l.b16 %v253
        %v440 = vunpack.c.l.b16 %v254
        %v441 = vunpack.c.l.b16 %v255
        %v442 = vunpack.c.l.b16 %v256
        %v443 = vunpack.c.l.b16 %v257
        %v444 = vunpack.c.l.b16 %v258
        %v445 = vunpack.c.l.b16 %v259
        %v446 = vunpack.c.l.b16 %v260
        %v447 = vunpack.c.l.b16 %v261
        %v448 = vunpack.c.l.b16 %v262
        %v449 = vunpack.c.l.b16 %v263
        %v450 = vunpack.c.l.b16 %v264
        %v451 = vunpack.c.l.b16 %v265
        %v452 = vunpack.c.l.b16 %v266
        %v453 = vunpack.c.l.b16 %v267
        %v454 = vunpack.c.l.b16 %v268
        %v455 = vunpack.c.l.b16 %v269
        %v456 = vunpack.c.l.b16 %v270
        %v457 = vunpack.c.l.b16 %v271
        %v458 = vpack.c.b16 %v440, %v439
        %v459 = vpack.c.b16 %v442, %v441
        %v460 = vpack.c.b16 %v444, %v443
        %v461 = vpack.c.b16 %v446, %v445
        %v462 = vpack.c.b16 %v448, %v447
        %v463 = vpack.c.b16 %v450, %v449
        %v464 = vpack.c.b16 %v452, %v451
        %v465 = vpack.c.b16 %v454, %v453
        %v466 = vpack.c.b16 %v456, %v455
        %v467 = vpack.c.b16 %v457, %v457
        %vm477 = vcmask 154624
        %v479 = vsel %vm477, %v373, 0
        %v482 = vsel %vm477, %v375, 0
        %v485 = vsel %vm477, %v377, 0
        %v488 = vsel %vm477, %v379, 0
        %v491 = vsel %vm477, %v381, 0
        %v494 = vsel %vm477, %v383, 0
        %v497 = vsel %vm477, %v385, 0
        %v500 = vsel %vm477, %v387, 0
        %v503 = vsel %vm477, %v389, 0
        %v506 = vsel %vm477, %v391, 0
        %v509 = vsel %vm477, %v393, 0
        %v512 = vsel %vm477, %v395, 0
        %v515 = vsel %vm477, %v397, 0
        %v518 = vsel %vm477, %v399, 0
        %v521 = vsel %vm477, %v401, 0
        %v524 = vsel %vm477, %v403, 0
        %vm526 = vcmask 1040384
        %vm527 = vcmask 1041408
        %v528 = vsel %vm526, 4294967295, 65535
        %v529 = vsel %vm527, %v528, 0
        %v531 = vand.u32 %v467, %v529
        %533 = vmatpush.bf16.msra.mxu0 %v465
        %534 = vmatpush.bf16.msra.mxu0 %v464
        %535 = vmatpush.bf16.msra.mxu0 %v463
        %536 = vmatpush.bf16.msra.mxu0 %v462
        %537 = vmatpush.bf16.msra.mxu0 %v461
        %538 = vmatpush.bf16.msra.mxu0 %v460
        %539 = vmatpush.bf16.msra.mxu0 %v459
        %540 = vmatpush.bf16.msra.mxu0 %v458
        %541 = vmatmul.bf16.gmra.mxu0 %v372
        %v542 = vpop.f32.mrf.mxu0
        %v543 = vadd.f32 %v274, %v542
        %v544 = vpop.f32.mrf.mxu0
        %v545 = vadd.f32 %v274, %v544
        %546 = vmatmul.bf16.gmra.mxu0 %v374
        %v547 = vpop.f32.mrf.mxu0
        %v548 = vadd.f32 %v274, %v547
        %v549 = vpop.f32.mrf.mxu0
        %v550 = vadd.f32 %v274, %v549
        %551 = vmatmul.bf16.gmra.mxu0 %v376
        %v552 = vpop.f32.mrf.mxu0
        %v553 = vadd.f32 %v274, %v552
        %v554 = vpop.f32.mrf.mxu0
        %v555 = vadd.f32 %v274, %v554
        %556 = vmatmul.bf16.gmra.mxu0 %v378
        %v557 = vpop.f32.mrf.mxu0
        %v558 = vadd.f32 %v274, %v557
        %v559 = vpop.f32.mrf.mxu0
        %v560 = vadd.f32 %v274, %v559
        %561 = vmatmul.bf16.gmra.mxu0 %v380
        %v562 = vpop.f32.mrf.mxu0
        %v563 = vadd.f32 %v274, %v562
        %v564 = vpop.f32.mrf.mxu0
        %v565 = vadd.f32 %v274, %v564
        %566 = vmatmul.bf16.gmra.mxu0 %v382
        %v567 = vpop.f32.mrf.mxu0
        %v568 = vadd.f32 %v274, %v567
        %v569 = vpop.f32.mrf.mxu0
        %v570 = vadd.f32 %v274, %v569
        %571 = vmatmul.bf16.gmra.mxu0 %v384
        %v572 = vpop.f32.mrf.mxu0
        %v573 = vadd.f32 %v274, %v572
        %v574 = vpop.f32.mrf.mxu0
        %v575 = vadd.f32 %v274, %v574
        %576 = vmatmul.bf16.gmra.mxu0 %v386
        %v577 = vpop.f32.mrf.mxu0
        %v578 = vadd.f32 %v274, %v577
        %v579 = vpop.f32.mrf.mxu0
        %v580 = vadd.f32 %v274, %v579
        %581 = vmatmul.bf16.gmra.mxu0 %v388
        %v582 = vpop.f32.mrf.mxu0
        %v583 = vadd.f32 %v274, %v582
        %v584 = vpop.f32.mrf.mxu0
        %v585 = vadd.f32 %v274, %v584
        %586 = vmatmul.bf16.gmra.mxu0 %v390
        %v587 = vpop.f32.mrf.mxu0
        %v588 = vadd.f32 %v274, %v587
        %v589 = vpop.f32.mrf.mxu0
        %v590 = vadd.f32 %v274, %v589
        %591 = vmatmul.bf16.gmra.mxu0 %v392
        %v592 = vpop.f32.mrf.mxu0
        %v593 = vadd.f32 %v274, %v592
        %v594 = vpop.f32.mrf.mxu0
        %v595 = vadd.f32 %v274, %v594
        %596 = vmatmul.bf16.gmra.mxu0 %v394
        %v597 = vpop.f32.mrf.mxu0
        %v598 = vadd.f32 %v274, %v597
        %v599 = vpop.f32.mrf.mxu0
        %v600 = vadd.f32 %v274, %v599
        %601 = vmatmul.bf16.gmra.mxu0 %v396
        %v602 = vpop.f32.mrf.mxu0
        %v603 = vadd.f32 %v274, %v602
        %v604 = vpop.f32.mrf.mxu0
        %v605 = vadd.f32 %v274, %v604
        %606 = vmatmul.bf16.gmra.mxu0 %v398
        %v607 = vpop.f32.mrf.mxu0
        %v608 = vadd.f32 %v274, %v607
        %v609 = vpop.f32.mrf.mxu0
        %v610 = vadd.f32 %v274, %v609
        %611 = vmatmul.bf16.gmra.mxu0 %v400
        %v612 = vpop.f32.mrf.mxu0
        %v613 = vadd.f32 %v274, %v612
        %v614 = vpop.f32.mrf.mxu0
        %v615 = vadd.f32 %v274, %v614
        %616 = vmatmul.bf16.gmra.mxu0 %v402
        %v617 = vpop.f32.mrf.mxu0
        %v618 = vadd.f32 %v274, %v617
        %v619 = vpop.f32.mrf.mxu0
        %v620 = vadd.f32 %v274, %v619
        %621 = vdwg.mxu0
        %622 = vmatpush.bf16.msra.mxu0 0
        %623 = vmatpush.bf16.msra.mxu0 0
        %624 = vmatpush.bf16.msra.mxu0 0
        %625 = vmatpush.bf16.msra.mxu0 0
        %626 = vmatpush.bf16.msra.mxu0 0
        %627 = vmatpush.bf16.msra.mxu0 0
        %628 = vmatpush.bf16.msra.mxu0 %v531
        %629 = vmatpush.bf16.msra.mxu0 %v466
        %630 = vmatmul.bf16.gmra.mxu0 %v479
        %v631 = vpop.f32.mrf.mxu0
        %v632 = vadd.f32 %v543, %v631
        %v633 = vpop.f32.mrf.mxu0
        %v634 = vadd.f32 %v545, %v633
        %635 = vmatmul.bf16.gmra.mxu0 %v482
        %v636 = vpop.f32.mrf.mxu0
        %v637 = vadd.f32 %v548, %v636
        %v638 = vpop.f32.mrf.mxu0
        %v639 = vadd.f32 %v550, %v638
        %640 = vmatmul.bf16.gmra.mxu0 %v485
        %v641 = vpop.f32.mrf.mxu0
        %v642 = vadd.f32 %v553, %v641
        %v643 = vpop.f32.mrf.mxu0
        %v644 = vadd.f32 %v555, %v643
        %645 = vmatmul.bf16.gmra.mxu0 %v488
        %v646 = vpop.f32.mrf.mxu0
        %v647 = vadd.f32 %v558, %v646
        %v648 = vpop.f32.mrf.mxu0
        %v649 = vadd.f32 %v560, %v648
        %650 = vmatmul.bf16.gmra.mxu0 %v491
        %v651 = vpop.f32.mrf.mxu0
        %v652 = vadd.f32 %v563, %v651
        %v653 = vpop.f32.mrf.mxu0
        %v654 = vadd.f32 %v565, %v653
        %655 = vmatmul.bf16.gmra.mxu0 %v494
        %v656 = vpop.f32.mrf.mxu0
        %v657 = vadd.f32 %v568, %v656
        %v658 = vpop.f32.mrf.mxu0
        %v659 = vadd.f32 %v570, %v658
        %660 = vmatmul.bf16.gmra.mxu0 %v497
        %v661 = vpop.f32.mrf.mxu0
        %v662 = vadd.f32 %v573, %v661
        %v663 = vpop.f32.mrf.mxu0
        %v664 = vadd.f32 %v575, %v663
        %665 = vmatmul.bf16.gmra.mxu0 %v500
        %v666 = vpop.f32.mrf.mxu0
        %v667 = vadd.f32 %v578, %v666
        %v668 = vpop.f32.mrf.mxu0
        %v669 = vadd.f32 %v580, %v668
        %670 = vmatmul.bf16.gmra.mxu0 %v503
        %v671 = vpop.f32.mrf.mxu0
        %v672 = vadd.f32 %v583, %v671
        %v673 = vpop.f32.mrf.mxu0
        %v674 = vadd.f32 %v585, %v673
        %675 = vmatmul.bf16.gmra.mxu0 %v506
        %v676 = vpop.f32.mrf.mxu0
        %v677 = vadd.f32 %v588, %v676
        %v678 = vpop.f32.mrf.mxu0
        %v679 = vadd.f32 %v590, %v678
        %680 = vmatmul.bf16.gmra.mxu0 %v509
        %v681 = vpop.f32.mrf.mxu0
        %v682 = vadd.f32 %v593, %v681
        %v683 = vpop.f32.mrf.mxu0
        %v684 = vadd.f32 %v595, %v683
        %685 = vmatmul.bf16.gmra.mxu0 %v512
        %v686 = vpop.f32.mrf.mxu0
        %v687 = vadd.f32 %v598, %v686
        %v688 = vpop.f32.mrf.mxu0
        %v689 = vadd.f32 %v600, %v688
        %690 = vmatmul.bf16.gmra.mxu0 %v515
        %v691 = vpop.f32.mrf.mxu0
        %v692 = vadd.f32 %v603, %v691
        %v693 = vpop.f32.mrf.mxu0
        %v694 = vadd.f32 %v605, %v693
        %695 = vmatmul.bf16.gmra.mxu0 %v518
        %v696 = vpop.f32.mrf.mxu0
        %v697 = vadd.f32 %v608, %v696
        %v698 = vpop.f32.mrf.mxu0
        %v699 = vadd.f32 %v610, %v698
        %700 = vmatmul.bf16.gmra.mxu0 %v521
        %v701 = vpop.f32.mrf.mxu0
        %v702 = vadd.f32 %v613, %v701
        %v703 = vpop.f32.mrf.mxu0
        %v704 = vadd.f32 %v615, %v703
        %705 = vmatmul.bf16.gmra.mxu0 %v524
        %v706 = vpop.f32.mrf.mxu0
        %v707 = vadd.f32 %v618, %v706
        %v708 = vpop.f32.mrf.mxu0
        %v709 = vadd.f32 %v620, %v708
        %710 = vdwg.mxu0
        %v711 = vmax.f32 %v632, 0.0
        %v712 = vmax.f32 %v634, 0.0
        %v713 = vmax.f32 %v637, 0.0
        %v714 = vmax.f32 %v639, 0.0
        %v715 = vmax.f32 %v642, 0.0
        %v716 = vmax.f32 %v644, 0.0
        %v717 = vmax.f32 %v647, 0.0
        %v718 = vmax.f32 %v649, 0.0
        %v719 = vmax.f32 %v652, 0.0
        %v720 = vmax.f32 %v654, 0.0
        %v721 = vmax.f32 %v657, 0.0
        %v722 = vmax.f32 %v659, 0.0
        %v723 = vmax.f32 %v662, 0.0
        %v724 = vmax.f32 %v664, 0.0
        %v725 = vmax.f32 %v667, 0.0
        %v726 = vmax.f32 %v669, 0.0
        %v727 = vmax.f32 %v672, 0.0
        %v728 = vmax.f32 %v674, 0.0
        %v729 = vmax.f32 %v677, 0.0
        %v730 = vmax.f32 %v679, 0.0
        %v731 = vmax.f32 %v682, 0.0
        %v732 = vmax.f32 %v684, 0.0
        %v733 = vmax.f32 %v687, 0.0
        %v734 = vmax.f32 %v689, 0.0
        %v735 = vmax.f32 %v692, 0.0
        %v736 = vmax.f32 %v694, 0.0
        %v737 = vmax.f32 %v697, 0.0
        %v738 = vmax.f32 %v699, 0.0
        %v739 = vmax.f32 %v702, 0.0
        %v740 = vmax.f32 %v704, 0.0
        %v741 = vmax.f32 %v707, 0.0
        %v742 = vmax.f32 %v709, 0.0
        %v743 = vpack.c.bf16 %v711, %v711
        %v744 = vpack.c.bf16 %v712, %v712
        %v745 = vpack.c.bf16 %v713, %v713
        %v746 = vpack.c.bf16 %v714, %v714
        %v747 = vpack.c.bf16 %v715, %v715
        %v748 = vpack.c.bf16 %v716, %v716
        %v749 = vpack.c.bf16 %v717, %v717
        %v750 = vpack.c.bf16 %v718, %v718
        %v751 = vpack.c.bf16 %v719, %v719
        %v752 = vpack.c.bf16 %v720, %v720
        %v753 = vpack.c.bf16 %v721, %v721
        %v754 = vpack.c.bf16 %v722, %v722
        %v755 = vpack.c.bf16 %v723, %v723
        %v756 = vpack.c.bf16 %v724, %v724
        %v757 = vpack.c.bf16 %v725, %v725
        %v758 = vpack.c.bf16 %v726, %v726
        %v759 = vpack.c.bf16 %v727, %v727
        %v760 = vpack.c.bf16 %v728, %v728
        %v761 = vpack.c.bf16 %v729, %v729
        %v762 = vpack.c.bf16 %v730, %v730
        %v763 = vpack.c.bf16 %v731, %v731
        %v764 = vpack.c.bf16 %v732, %v732
        %v765 = vpack.c.bf16 %v733, %v733
        %v766 = vpack.c.bf16 %v734, %v734
        %v767 = vpack.c.bf16 %v735, %v735
        %v768 = vpack.c.bf16 %v736, %v736
        %v769 = vpack.c.bf16 %v737, %v737
        %v770 = vpack.c.bf16 %v738, %v738
        %v771 = vpack.c.bf16 %v739, %v739
        %v772 = vpack.c.bf16 %v740, %v740
        %v773 = vpack.c.bf16 %v741, %v741
        %v774 = vpack.c.bf16 %v742, %v742
        %vm775 = vcmask 519168
        %776 = vst.msk [vmem:[%s204] sm:$0xf] %vm775, %v743
        %777 = vst.msk [vmem:[%s204 + $0x4] sm:$0xf] %vm775, %v744
        %778 = vst.msk [vmem:[%s204 + $0x8] sm:$0xf] %vm775, %v745
        %779 = vst.msk [vmem:[%s204 + $0xc] sm:$0xf] %vm775, %v746
        %780 = vst.msk [vmem:[%s204 + $0x10] sm:$0xf] %vm775, %v747
        %781 = vst.msk [vmem:[%s204 + $0x14] sm:$0xf] %vm775, %v748
        %782 = vst.msk [vmem:[%s204 + $0x18] sm:$0xf] %vm775, %v749
        %783 = vst.msk [vmem:[%s204 + $0x1c] sm:$0xf] %vm775, %v750
        %784 = vst.msk [vmem:[%s204 + $0x20] sm:$0xf] %vm775, %v751
        %785 = vst.msk [vmem:[%s204 + $0x24] sm:$0xf] %vm775, %v752
        %786 = vst.msk [vmem:[%s204 + $0x28] sm:$0xf] %vm775, %v753
        %787 = vst.msk [vmem:[%s204 + $0x2c] sm:$0xf] %vm775, %v754
        %788 = vst.msk [vmem:[%s204 + $0x30] sm:$0xf] %vm775, %v755
        %789 = vst.msk [vmem:[%s204 + $0x34] sm:$0xf] %vm775, %v756
        %790 = vst.msk [vmem:[%s204 + $0x38] sm:$0xf] %vm775, %v757
        %791 = vst.msk [vmem:[%s204 + $0x3c] sm:$0xf] %vm775, %v758
        %792 = vst.msk [vmem:[%s204 + $0x40] sm:$0xf] %vm775, %v759
        %793 = vst.msk [vmem:[%s204 + $0x44] sm:$0xf] %vm775, %v760
        %794 = vst.msk [vmem:[%s204 + $0x48] sm:$0xf] %vm775, %v761
        %795 = vst.msk [vmem:[%s204 + $0x4c] sm:$0xf] %vm775, %v762
        %796 = vst.msk [vmem:[%s204 + $0x50] sm:$0xf] %vm775, %v763
        %797 = vst.msk [vmem:[%s204 + $0x54] sm:$0xf] %vm775, %v764
        %798 = vst.msk [vmem:[%s204 + $0x58] sm:$0xf] %vm775, %v765
        %799 = vst.msk [vmem:[%s204 + $0x5c] sm:$0xf] %vm775, %v766
        %800 = vst.msk [vmem:[%s204 + $0x60] sm:$0xf] %vm775, %v767
        %801 = vst.msk [vmem:[%s204 + $0x64] sm:$0xf] %vm775, %v768
        %802 = vst.msk [vmem:[%s204 + $0x68] sm:$0xf] %vm775, %v769
        %803 = vst.msk [vmem:[%s204 + $0x6c] sm:$0xf] %vm775, %v770
        %804 = vst.msk [vmem:[%s204 + $0x70] sm:$0xf] %vm775, %v771
        %805 = vst.msk [vmem:[%s204 + $0x74] sm:$0xf] %vm775, %v772
        %806 = vst.msk [vmem:[%s204 + $0x78] sm:$0xf] %vm775, %v773
        %807 = vst.msk [vmem:[%s204 + $0x7c] sm:$0xf] %vm775, %v774
        %s808 = sand.u32 %s117, 1
        %s809 = scalar_lea.sflag [#allocation3], %s808
        %s810 = sand.u32 %s117, 1
        %s811 = smul.addr %s810, 128
        %s812 = scalar_lea.vmem [#allocation2], %s811
        // Predicated region
        $region33: #{conv_im2col.1} parent=31 // pred_check
          %p813 = pneg %p127
        $region34: #{conv_im2col.1} parent=31 // pred_check_branch
          %815 = sbr.rel (%p813) target = $region36
        $region35: #{conv_im2col.1} parent=31 // pred_region
          %s816 = smul.u32 32, %s22
          %818 = vsyncadd %s809, 0
          %s819 = sadd.s32 %s21, %s816
          %s820 = smul.addr %s819, 4
          %s821 = scalar_lea.hbm %s3, %s820
          %s822 = sshll.u32 %s812, 4
          %s823 = int_to_ptr.vmem [resolvable:$true] %s822
          %s824 = sshll.u32 %s821, 4
          %s825 = int_to_ptr.hbm [resolvable:$true] %s824
          %830 = dma.vmem_to_hbm [thread:$0]  %s823, 2048, %s825, %s809, 64, 64, 4
        $region36: #{conv_im2col.1} parent=31 // pred_fallthru
          _
      $region32: #{conv_im2col.1} parent=5 // pred_fallthru
        _
      %p831 = scmp.le.s32.totalorder 2, %s12
      // Predicated region
      $region37: #{conv_im2col.1} parent=5 // pred_check
        %p832 = pneg %p831
      $region38: #{conv_im2col.1} parent=5 // pred_check_branch
        %834 = sbr.rel (%p832) target = $region40
      $region39: #{conv_im2col.1} parent=5 // pred_region
        %s835 = ssub.s32 %s12, 2
        // Predicated region
        $region41: #{conv_im2col.1} parent=39 // pred_check
          %p836 = pneg %p133
        $region42: #{conv_im2col.1} parent=39 // pred_check_branch
          %838 = sbr.rel (%p836) target = $region44
        $region43: #{conv_im2col.1} parent=39 // pred_region
          %s839 = sand.u32 %s118, 1
          %s840 = scalar_lea.sflag [#allocation3], %s839
          %s841 = sand.u32 %s118, 1
          %s842 = smul.addr %s841, 128
          %s843 = scalar_lea.vmem [#allocation2], %s842
          %845 = dma.done %s840, 2048
        $region44: #{conv_im2col.1} parent=39 // pred_fallthru
          _
      $region40: #{conv_im2col.1} parent=5 // pred_fallthru
        _
    $region6: #{conv_im2col.1} parent=1 // loop_footer
      %s16 = sadd.s32 1, %s12
    $region7: #{conv_im2col.1} parent=1 // loop_footer_branch
      %11 = sbr.rel target = $region3
    $region8: #{conv_im2col.1} parent=1 // loop_exit
      _
    %846 = vsyncpa [#allocation3], 1
    %s847 = scalar_lea.sflag [#allocation3], 1
    %848 = vsyncpa %s847, 1

</llo_original>
